<compile_context>
chip_gen: v7x
topology: tpu7x:2x2x1
jax: 0.10.0
libtpu: 0.0.40
codegen_flags: <defaults>
</compile_context>

<pallas_src>
import functools

import jax
import jax.numpy as jnp
from jax import lax
from jax.experimental import pallas as pl
from jax.experimental.pallas import tpu as pltpu

# Name changed across JAX versions; keep a fallback so the script runs on older wheels.
_CompilerParams = getattr(pltpu, "CompilerParams", None) or getattr(
    pltpu, "TPUCompilerParams")


def _round_up(x, m):
    return (x + m - 1) // m * m


@functools.lru_cache(maxsize=1)
def _vmem_sizes():
    """(intermediate budget, vmem_limit_bytes) from the local TPU generation."""
    cap = None
    try:
        cap = int(pltpu.get_tpu_info().vmem_capacity_bytes)
    except Exception:
        cap = None
    if not cap:
        cap = 64 * 1024 * 1024                      # v7x-safe fallback
    budget = int(cap * 0.60)                        # ~38 MiB v7x, ~76 MiB v5e/v6e
    limit = min(int(cap * 0.75), cap - (4 << 20))   # 48 MiB v7x, 96 MiB v5e/v6e
    return budget, limit


def _make_vq_kernel(*, num_embeddings, tile_n, tiles_per_core, n_valid, has_pad,
                    dist_dtype, gather_dtype):
    K = num_embeddings

    def kernel(x_ref, e_ref, esq_ref, q_ref, idx_ref, counts_ref, sse_ref):
        i = pl.program_id(1)
        g = pl.program_id(0) * tiles_per_core + i        # global tile index

        # counts is a per-core resident accumulator: zero it on this core's first step.
        @pl.when(i == 0)
        def _init():
            counts_ref[...] = jnp.zeros_like(counts_ref)

        x = x_ref[...]                                    # (TILE_N, D) native dtype
        e = e_ref[...]                                    # (K, D) codebook (resident)

        # argmin_k(|x|^2 + |e_k|^2 - 2 x.e_k) == argmin_k(0.5*|e_k|^2 - x.e_k)
        # (|x|^2 is constant along K).  0.5*|e_k|^2 comes precomputed via esq_ref.
        xe = lax.dot_general(x.astype(dist_dtype), e.astype(dist_dtype),
                             (((1,), (1,)), ((), ())),
                             preferred_element_type=jnp.float32)         # (TILE_N, K)
        score = esq_ref[...] - xe                                        # (TILE_N, K)

        # First-occurrence argmin along K (matches torch.argmin tie-breaking).
        min_s = jnp.min(score, axis=1, keepdims=True)                    # (TILE_N, 1)
        col = lax.broadcasted_iota(jnp.int32, score.shape, 1)            # (TILE_N, K)
        idx_col = jnp.min(jnp.where(score <= min_s, col, K), axis=1,
                          keepdims=True)                                 # (TILE_N, 1)
        enc = (col == idx_col).astype(gather_dtype)                      # one-hot (VMEM)

        # quantized = one_hot @ codebook (exact row select even in bf16).
        quant = jnp.dot(enc, e.astype(gather_dtype),
                        preferred_element_type=jnp.float32)              # (TILE_N, D)
        q_ref[...] = quant.astype(q_ref.dtype)

        # Lane-dense int32 indices: contract the one-hot with the code-id row on the
        # MXU -> (1, TILE_N) row store instead of a masked 1-lane column store.
        col_row = lax.broadcasted_iota(jnp.int32, (1, K), 1)
        if gather_dtype == jnp.float32 or K <= 256:
            idx_f = lax.dot_general(col_row.astype(gather_dtype), enc,
                                    (((1,), (1,)), ((), ())),
                                    preferred_element_type=jnp.float32)  # (1, TILE_N)
        else:
            # bf16 only holds integers exactly up to 256: split the code id hi/lo.
            hi = lax.dot_general((col_row // 256).astype(gather_dtype), enc,
                                 (((1,), (1,)), ((), ())),
                                 preferred_element_type=jnp.float32)
            lo = lax.dot_general((col_row % 256).astype(gather_dtype), enc,
                                 (((1,), (1,)), ((), ())),
                                 preferred_element_type=jnp.float32)
            idx_f = hi * 256.0 + lo
        idx_ref[...] = idx_f.astype(jnp.int32).reshape(1, 1, tile_n)

        diff = quant - x.astype(jnp.float32)                             # (TILE_N, D)

        def _accumulate(valid_row, valid_col):
            # Per-code counts on the MXU (contraction over TILE_N); one-hot/mask are
            # exactly 0/1 so the f32-accumulated result is exact.
            w = jnp.ones((1, tile_n), gather_dtype) if valid_row is None else valid_row
            cnt = jnp.dot(w, enc, preferred_element_type=jnp.float32)    # (1, K)
            counts_ref[...] += cnt.reshape(1, 1, K)
            d = diff if valid_col is None else diff * valid_col
            sse_ref[...] = jnp.sum(d * d).reshape(1, 1, 1)               # per-tile SSE

        if has_pad:
            needs_mask = (g + 1) * tile_n > n_valid       # tile contains padded rows?

            @pl.when(jnp.logical_not(needs_mask))
            def _fast():
                _accumulate(None, None)

            @pl.when(needs_mask)
            def _masked():
                base = g * tile_n
                lane = lax.broadcasted_iota(jnp.int32, (1, tile_n), 1)
                row = lax.broadcasted_iota(jnp.int32, (tile_n, 1), 0)
                _accumulate((base + lane < n_valid).astype(gather_dtype),
                            (base + row < n_valid).astype(jnp.float32))
        else:
            _accumulate(None, None)

    return kernel


@functools.partial(jax.jit,
                   static_argnames=("commitment_cost", "tile_n", "bf16_distance"))
def vector_quantizer_forward(inputs, embedding, commitment_cost,
                             tile_n=None, bf16_distance=False):
    """Forward pass of the VQ layer.

    inputs: (..., D) channel-last activations; embedding: (K, D).
    Returns (loss, quantized, perplexity, encodings) like the PyTorch module.
    """
    input_shape = inputs.shape
    K, D = embedding.shape
    flat = inputs.reshape(-1, D)                    # keep native dtype; no f32 upcast
    N = flat.shape[0]

    in_bf16 = flat.dtype == jnp.bfloat16
    gather_dtype = jnp.bfloat16 if in_bf16 else jnp.float32
    dist_dtype = jnp.bfloat16 if (in_bf16 or bf16_distance) else jnp.float32

    budget, vmem_limit = _vmem_sizes()

    if tile_n is None:
        in_bytes = flat.dtype.itemsize
        fixed = 2 * K * D * 4 + 2 * K * 4           # codebook (2 buffers) + |e|^2 row
        per_row = 5 * 4 * K + (4 * in_bytes + 8) * D + 32   # score/one-hot + x/q/diff
        cap_rows = max(8, (budget - fixed) // per_row)
        tile_n = min(2048, cap_rows, _round_up(N, 8))
    tile_n = max(8, int(tile_n) // 8 * 8)

    num_tiles = -(-N // tile_n)
    # Leading parallel axis feeds both v7x TensorCores; plain serial loop on 1-TC chips.
    num_splits = 2 if num_tiles >= 2 else 1
    tiles_per_core = -(-num_tiles // num_splits)
    grid_tiles = num_splits * tiles_per_core
    n_pad = grid_tiles * tile_n
    if n_pad != N:
        flat = jnp.pad(flat, ((0, n_pad - N), (0, 0)))

    # Hoisted out of the grid: 0.5 * |e_k|^2 as a resident (1, K) f32 row.
    e_sq_half = (0.5 * jnp.sum(embedding.astype(jnp.float32) ** 2, axis=1))[None, :]

    kernel = _make_vq_kernel(num_embeddings=K, tile_n=tile_n,
                             tiles_per_core=tiles_per_core, n_valid=N,
                             has_pad=(n_pad != N),
                             dist_dtype=dist_dtype, gather_dtype=gather_dtype)

    def x_map(c, i):
        return (c * tiles_per_core + i, 0)

    def tile3_map(c, i):
        return (c * tiles_per_core + i, 0, 0)

    q, idx, counts, sse = pl.pallas_call(
        kernel,
        out_shape=(
            jax.ShapeDtypeStruct((n_pad, D), inputs.dtype),          # quantized rows
            jax.ShapeDtypeStruct((grid_tiles, 1, tile_n), jnp.int32),  # code indices
            jax.ShapeDtypeStruct((num_splits, 1, K), jnp.float32),    # per-core counts
            jax.ShapeDtypeStruct((grid_tiles, 1, 1), jnp.float32),    # per-tile SSE
        ),
        grid_spec=pltpu.PrefetchScalarGridSpec(
            num_scalar_prefetch=0,
            grid=(num_splits, tiles_per_core),
            in_specs=[
                pl.BlockSpec((tile_n, D), x_map),                 # input tile
                pl.BlockSpec((K, D), lambda c, i: (0, 0)),        # codebook (resident)
                pl.BlockSpec((1, K), lambda c, i: (0, 0)),        # 0.5*|e|^2 (resident)
            ],
            out_specs=(
                pl.BlockSpec((tile_n, D), x_map),                 # quantized tile
                pl.BlockSpec((1, 1, tile_n), tile3_map),          # lane-dense indices
                pl.BlockSpec((1, 1, K), lambda c, i: (c, 0, 0)),  # per-core counts acc
                pl.BlockSpec((1, 1, 1), tile3_map),               # per-tile SSE
            ),
        ),
        compiler_params=_CompilerParams(
            dimension_semantics=("parallel", "arbitrary"),
            vmem_limit_bytes=vmem_limit,
        ),
    )(flat, embedding, e_sq_half)

    quantized = q[:N].reshape(input_shape)
    indices = idx.reshape(-1)[:N]

    # Module API returns the dense one-hot; rebuild it outside the kernel instead of
    # streaming an f32 (N, K) tensor out of VMEM.
    encodings = jax.nn.one_hot(indices, K, dtype=jnp.float32)

    mse = jnp.sum(sse) / (N * D)
    # q_latent_loss and e_latent_loss are numerically identical in the forward pass.
    loss = mse + commitment_cost * mse
    avg_probs = jnp.sum(counts.reshape(num_splits, K), axis=0) / N
    perplexity = jnp.exp(-jnp.sum(avg_probs * jnp.log(avg_probs + 1e-10)))

    # Straight-through estimator: forward value of inputs + (quantized-inputs).detach()
    # is exactly `quantized`.
    # TODO(synk): .detach()/stop-gradient plumbing is backward-only; not modeled here.
    return loss, quantized, perplexity, encodings


def _reference_forward(inputs, embedding, commitment_cost):
    """Pure-JAX reference mirroring the PyTorch forward (forward values only)."""
    input_shape = inputs.shape
    K, D = embedding.shape
    flat = inputs.reshape(-1, D)
    dist = (jnp.sum(flat ** 2, axis=1, keepdims=True)
            + jnp.sum(embedding ** 2, axis=1)
            - 2.0 * flat @ embedding.T)
    idx = jnp.argmin(dist, axis=1)
    enc = jax.nn.one_hot(idx, K, dtype=jnp.float32)
    quant = (enc @ embedding).reshape(input_shape)
    mse = jnp.mean((quant - inputs) ** 2)
    loss = mse + commitment_cost * mse
    avg = jnp.mean(enc, axis=0)
    perp = jnp.exp(-jnp.sum(avg * jnp.log(avg + 1e-10)))
    return loss, quant, perp, enc


if __name__ == "__main__":
    # Small deterministic example: batch=2, spatial=5x5, embedding_dim=16, 32 codes.
    # N = 2*5*5 = 50 flattened vectors -> exercises padded/masked tiles; the forced
    # tile_n=16 run exercises the 2-way split grid + ragged last tile.
    num_embeddings = 32
    embedding_dim = 16
    commitment_cost = 0.25
    B, H, W = 2, 5, 5

    key = jax.random.PRNGKey(0)
    k_x, k_e = jax.random.split(key)
    inputs = jax.random.normal(k_x, (B, H, W, embedding_dim), dtype=jnp.float32)
    # nn.Embedding weight init: uniform(-1/K, 1/K)
    embedding = jax.random.uniform(
        k_e, (num_embeddings, embedding_dim),
        minval=-1.0 / num_embeddings, maxval=1.0 / num_embeddings,
        dtype=jnp.float32)

    out_default = vector_quantizer_forward(
        inputs, embedding, commitment_cost=commitment_cost)
    out_tiled = vector_quantizer_forward(
        inputs, embedding, commitment_cost=commitment_cost, tile_n=16)
    jax.block_until_ready((out_default, out_tiled))

    r_loss, r_quant, r_perp, r_enc = _reference_forward(
        inputs, embedding, commitment_cost)
    for (loss, quantized, perplexity, encodings) in (out_default, out_tiled):
        assert jnp.allclose(loss, r_loss, atol=1e-5), (loss, r_loss)
        assert jnp.allclose(quantized, r_quant, atol=1e-5)
        assert jnp.allclose(perplexity, r_perp, atol=1e-4)
        assert jnp.allclose(encodings, r_enc)

    print("KERNEL_OK")
</pallas_src>

<mosaic_0001>
module attributes {stable_mosaic.version = 11 : i64} {
  func.func @kernel(%arg0: i32, %arg1: i32, %arg2: memref<56x16xf32, #tpu.memory_space<vmem>>, %arg3: memref<32x16xf32, #tpu.memory_space<vmem>>, %arg4: memref<1x32xf32, #tpu.memory_space<vmem>>, %arg5: memref<56x16xf32, #tpu.memory_space<vmem>>, %arg6: memref<1x1x56xi32, #tpu.memory_space<vmem>>, %arg7: memref<1x1x32xf32, #tpu.memory_space<vmem>>, %arg8: memref<1x1x1xf32, #tpu.memory_space<vmem>>) attributes {dimension_semantics = [#tpu.dimension_semantics<parallel>, #tpu.dimension_semantics<arbitrary>], iteration_bounds = array<i64: 1, 1>, scalar_prefetch = 0 : i64, scratch_operands = 0 : i64, tpu.core_type = #tpu.core_type<tc>, window_params = [{transform_indices = @transform_0, window_bounds = array<i64: 56, 16>}, {pipeline_mode = #tpu.pipeline_mode<synchronous>, transform_indices = @transform_1, window_bounds = array<i64: 32, 16>}, {pipeline_mode = #tpu.pipeline_mode<synchronous>, transform_indices = @transform_2, window_bounds = array<i64: 1, 32>}, {transform_indices = @transform_3, window_bounds = array<i64: 56, 16>}, {transform_indices = @transform_4, window_bounds = array<i64: 1, 1, 56>}, {transform_indices = @transform_5, window_bounds = array<i64: 1, 1, 32>}, {transform_indices = @transform_6, window_bounds = array<i64: 1, 1, 1>}]} {
    %c1_i32 = arith.constant 1 : i32
    %0 = arith.muli %arg0, %c1_i32 : i32
    %1 = arith.addi %0, %arg1 : i32
    %c0_i32 = arith.constant 0 : i32
    %2 = arith.cmpi eq, %arg1, %c0_i32 : i32
    %3 = arith.extui %2 : i1 to i32
    %c0_i32_0 = arith.constant 0 : i32
    %4 = arith.cmpi ne, %3, %c0_i32_0 : i32
    scf.if %4 {
      %cst_18 = arith.constant 0.000000e+00 : f32
      %41 = vector.broadcast %cst_18 : f32 to vector<1x1x32xf32>
      %c0_19 = arith.constant 0 : index
      %c0_20 = arith.constant 0 : index
      %c0_21 = arith.constant 0 : index
      %42 = vector.load %arg7[%c0_19, %c0_20, %c0_21] : memref<1x1x32xf32, #tpu.memory_space<vmem>>, vector<1x1x32xf32>
      tpu.vector_store %arg7[%c0_19, %c0_20, %c0_21], %41 {strides = array<i32>} : memref<1x1x32xf32, #tpu.memory_space<vmem>>, vector<1x1x32xf32>,
    } else {
    }
    %c0 = arith.constant 0 : index
    %c0_1 = arith.constant 0 : index
    %5 = vector.load %arg2[%c0, %c0_1] : memref<56x16xf32, #tpu.memory_space<vmem>>, vector<56x16xf32>
    %c0_2 = arith.constant 0 : index
    %c0_3 = arith.constant 0 : index
    %6 = vector.load %arg3[%c0_2, %c0_3] : memref<32x16xf32, #tpu.memory_space<vmem>>, vector<32x16xf32>
    %cst = arith.constant dense<0.000000e+00> : vector<56x32xf32>
    %7 = tpu.matmul %5, %6, %cst {dimension_numbers = #tpu.dot_dimension_numbers<[1], [1], [0], [0], [0, 0, 1, 0], [], []>} : vector<56x16xf32>, vector<32x16xf32>, vector<56x32xf32> -> vector<56x32xf32>
    %c0_4 = arith.constant 0 : index
    %c0_5 = arith.constant 0 : index
    %8 = vector.load %arg4[%c0_4, %c0_5] : memref<1x32xf32, #tpu.memory_space<vmem>>, vector<1x32xf32>
    %9 = vector.broadcast %8 : vector<1x32xf32> to vector<56x32xf32>
    %10 = arith.subf %9, %7 : vector<56x32xf32>
    %cst_6 = arith.constant dense<0x7F800000> : vector<56xf32>
    %11 = vector.multi_reduction <minimumf>, %10, %cst_6 [1] : vector<56x32xf32> to vector<56xf32>
    %12 = vector.shape_cast %11 : vector<56xf32> to vector<56x1xf32>
    %13 = tpu.iota {dimensions = array<i32: 1>} : vector<56x32xi32>
    %14 = vector.broadcast %12 : vector<56x1xf32> to vector<56x32xf32>
    %15 = arith.cmpf ole, %10, %14 : vector<56x32xf32>
    %c32_i32 = arith.constant 32 : i32
    %16 = vector.broadcast %c32_i32 : i32 to vector<56x32xi32>
    %17 = arith.select %15, %13, %16 : vector<56x32xi1>, vector<56x32xi32>
    %cst_7 = arith.constant dense<2147483647> : vector<56xi32>
    %18 = vector.multi_reduction <minsi>, %17, %cst_7 [1] : vector<56x32xi32> to vector<56xi32>
    %19 = vector.shape_cast %18 : vector<56xi32> to vector<56x1xi32>
    %20 = vector.broadcast %19 : vector<56x1xi32> to vector<56x32xi32>
    %21 = arith.cmpi eq, %13, %20 : vector<56x32xi32>
    %22 = arith.extui %21 : vector<56x32xi1> to vector<56x32xi32>
    %23 = arith.sitofp %22 : vector<56x32xi32> to vector<56x32xf32>
    %cst_8 = arith.constant dense<0.000000e+00> : vector<56x16xf32>
    %24 = tpu.matmul %23, %6, %cst_8 {dimension_numbers = #tpu.dot_dimension_numbers<[1], [0], [0], [1], [0, 0, 1, 1], [], []>} : vector<56x32xf32>, vector<32x16xf32>, vector<56x16xf32> -> vector<56x16xf32>
    %c0_9 = arith.constant 0 : index
    %c0_10 = arith.constant 0 : index
    %25 = vector.load %arg5[%c0_9, %c0_10] : memref<56x16xf32, #tpu.memory_space<vmem>>, vector<56x16xf32>
    tpu.vector_store %arg5[%c0_9, %c0_10], %24 {strides = array<i32>} : memref<56x16xf32, #tpu.memory_space<vmem>>, vector<56x16xf32>,
    %26 = tpu.iota {dimensions = array<i32: 1>} : vector<1x32xi32>
    %27 = arith.sitofp %26 : vector<1x32xi32> to vector<1x32xf32>
    %cst_11 = arith.constant dense<0.000000e+00> : vector<1x56xf32>
    %28 = tpu.matmul %27, %23, %cst_11 {dimension_numbers = #tpu.dot_dimension_numbers<[1], [1], [0], [0], [0, 0, 1, 0], [], []>} : vector<1x32xf32>, vector<56x32xf32>, vector<1x56xf32> -> vector<1x56xf32>
    %29 = arith.fptosi %28 : vector<1x56xf32> to vector<1x56xi32>
    %30 = vector.shape_cast %29 : vector<1x56xi32> to vector<1x1x56xi32>
    %c0_12 = arith.constant 0 : index
    %c0_13 = arith.constant 0 : index
    %c0_14 = arith.constant 0 : index
    %31 = vector.load %arg6[%c0_12, %c0_13, %c0_14] : memref<1x1x56xi32, #tpu.memory_space<vmem>>, vector<1x1x56xi32>
    tpu.vector_store %arg6[%c0_12, %c0_13, %c0_14], %30 {strides = array<i32>} : memref<1x1x56xi32, #tpu.memory_space<vmem>>, vector<1x1x56xi32>,
    %32 = arith.subf %24, %5 : vector<56x16xf32>
    %c1_i32_15 = arith.constant 1 : i32
    %33 = arith.addi %1, %c1_i32_15 : i32
    %c56_i32 = arith.constant 56 : i32
    %34 = arith.muli %33, %c56_i32 : i32
    %c50_i32 = arith.constant 50 : i32
    %35 = arith.cmpi sgt, %34, %c50_i32 : i32
    %true = arith.constant true
    %36 = arith.xori %35, %true : i1
    %37 = arith.extui %36 : i1 to i32
    %c0_i32_16 = arith.constant 0 : i32
    %38 = arith.cmpi ne, %37, %c0_i32_16 : i32
    scf.if %38 {
      %cst_18 = arith.constant 1.000000e+00 : f32
      %41 = vector.broadcast %cst_18 : f32 to vector<1x56xf32>
      %cst_19 = arith.constant dense<0.000000e+00> : vector<1x32xf32>
      %42 = tpu.matmul %41, %23, %cst_19 {dimension_numbers = #tpu.dot_dimension_numbers<[1], [0], [0], [1], [0, 0, 1, 1], [], []>} : vector<1x56xf32>, vector<56x32xf32>, vector<1x32xf32> -> vector<1x32xf32>
      %c0_20 = arith.constant 0 : index
      %c0_21 = arith.constant 0 : index
      %c0_22 = arith.constant 0 : index
      %43 = vector.load %arg7[%c0_20, %c0_21, %c0_22] : memref<1x1x32xf32, #tpu.memory_space<vmem>>, vector<1x1x32xf32>
      %44 = vector.shape_cast %42 : vector<1x32xf32> to vector<1x1x32xf32>
      %45 = arith.addf %43, %44 : vector<1x1x32xf32>
      %c0_23 = arith.constant 0 : index
      %c0_24 = arith.constant 0 : index
      %c0_25 = arith.constant 0 : index
      %46 = vector.load %arg7[%c0_23, %c0_24, %c0_25] : memref<1x1x32xf32, #tpu.memory_space<vmem>>, vector<1x1x32xf32>
      tpu.vector_store %arg7[%c0_23, %c0_24, %c0_25], %45 {strides = array<i32>} : memref<1x1x32xf32, #tpu.memory_space<vmem>>, vector<1x1x32xf32>,
      %47 = arith.mulf %32, %32 : vector<56x16xf32>
      %48 = vector.shape_cast %47 : vector<56x16xf32> to vector<1x56x16xf32>
      %cst_26 = arith.constant dense<0.000000e+00> : vector<1xf32>
      %49 = vector.multi_reduction <add>, %48, %cst_26 [1, 2] : vector<1x56x16xf32> to vector<1xf32>
      %50 = vector.shape_cast %49 : vector<1xf32> to vector<1x1x1xf32>
      %51 = vector.extract %50[0, 0, 0] : f32 from vector<1x1x1xf32>
      %52 = vector.broadcast %51 : f32 to vector<1x1x1xf32>
      %c0_27 = arith.constant 0 : index
      %c0_28 = arith.constant 0 : index
      %c0_29 = arith.constant 0 : index
      %53 = vector.load %arg8[%c0_27, %c0_28, %c0_29] : memref<1x1x1xf32, #tpu.memory_space<vmem>>, vector<1x1x1xf32>
      tpu.vector_store %arg8[%c0_27, %c0_28, %c0_29], %52 {strides = array<i32>} : memref<1x1x1xf32, #tpu.memory_space<vmem>>, vector<1x1x1xf32>,
    } else {
    }
    %39 = arith.extui %35 : i1 to i32
    %c0_i32_17 = arith.constant 0 : i32
    %40 = arith.cmpi ne, %39, %c0_i32_17 : i32
    scf.if %40 {
      %c56_i32_18 = arith.constant 56 : i32
      %41 = arith.muli %1, %c56_i32_18 : i32
      %42 = tpu.iota {dimensions = array<i32: 1>} : vector<1x56xi32>
      %43 = tpu.iota {dimensions = array<i32: 0>} : vector<56x1xi32>
      %44 = vector.broadcast %41 : i32 to vector<1x56xi32>
      %45 = arith.addi %44, %42 : vector<1x56xi32>
      %c50_i32_19 = arith.constant 50 : i32
      %46 = vector.broadcast %c50_i32_19 : i32 to vector<1x56xi32>
      %47 = arith.cmpi slt, %45, %46 : vector<1x56xi32>
      %48 = arith.extui %47 : vector<1x56xi1> to vector<1x56xi32>
      %49 = arith.sitofp %48 : vector<1x56xi32> to vector<1x56xf32>
      %50 = vector.broadcast %41 : i32 to vector<56x1xi32>
      %51 = arith.addi %50, %43 : vector<56x1xi32>
      %c50_i32_20 = arith.constant 50 : i32
      %52 = vector.broadcast %c50_i32_20 : i32 to vector<56x1xi32>
      %53 = arith.cmpi slt, %51, %52 : vector<56x1xi32>
      %54 = arith.extui %53 : vector<56x1xi1> to vector<56x1xi32>
      %55 = arith.sitofp %54 : vector<56x1xi32> to vector<56x1xf32>
      %cst_21 = arith.constant dense<0.000000e+00> : vector<1x32xf32>
      %56 = tpu.matmul %49, %23, %cst_21 {dimension_numbers = #tpu.dot_dimension_numbers<[1], [0], [0], [1], [0, 0, 1, 1], [], []>} : vector<1x56xf32>, vector<56x32xf32>, vector<1x32xf32> -> vector<1x32xf32>
      %c0_22 = arith.constant 0 : index
      %c0_23 = arith.constant 0 : index
      %c0_24 = arith.constant 0 : index
      %57 = vector.load %arg7[%c0_22, %c0_23, %c0_24] : memref<1x1x32xf32, #tpu.memory_space<vmem>>, vector<1x1x32xf32>
      %58 = vector.shape_cast %56 : vector<1x32xf32> to vector<1x1x32xf32>
      %59 = arith.addf %57, %58 : vector<1x1x32xf32>
      %c0_25 = arith.constant 0 : index
      %c0_26 = arith.constant 0 : index
      %c0_27 = arith.constant 0 : index
      %60 = vector.load %arg7[%c0_25, %c0_26, %c0_27] : memref<1x1x32xf32, #tpu.memory_space<vmem>>, vector<1x1x32xf32>
      tpu.vector_store %arg7[%c0_25, %c0_26, %c0_27], %59 {strides = array<i32>} : memref<1x1x32xf32, #tpu.memory_space<vmem>>, vector<1x1x32xf32>,
      %61 = vector.broadcast %55 : vector<56x1xf32> to vector<56x16xf32>
      %62 = arith.mulf %32, %61 : vector<56x16xf32>
      %63 = arith.mulf %62, %62 : vector<56x16xf32>
      %64 = vector.shape_cast %63 : vector<56x16xf32> to vector<1x56x16xf32>
      %cst_28 = arith.constant dense<0.000000e+00> : vector<1xf32>
      %65 = vector.multi_reduction <add>, %64, %cst_28 [1, 2] : vector<1x56x16xf32> to vector<1xf32>
      %66 = vector.shape_cast %65 : vector<1xf32> to vector<1x1x1xf32>
      %67 = vector.extract %66[0, 0, 0] : f32 from vector<1x1x1xf32>
      %68 = vector.broadcast %67 : f32 to vector<1x1x1xf32>
      %c0_29 = arith.constant 0 : index
      %c0_30 = arith.constant 0 : index
      %c0_31 = arith.constant 0 : index
      %69 = vector.load %arg8[%c0_29, %c0_30, %c0_31] : memref<1x1x1xf32, #tpu.memory_space<vmem>>, vector<1x1x1xf32>
      tpu.vector_store %arg8[%c0_29, %c0_30, %c0_31], %68 {strides = array<i32>} : memref<1x1x1xf32, #tpu.memory_space<vmem>>, vector<1x1x1xf32>,
    } else {
    }
    return
  }
  func.func @transform_0(%arg0: i32, %arg1: i32) -> (i32, i32) {
    %c1_i32 = arith.constant 1 : i32
    %0 = arith.muli %arg0, %c1_i32 : i32
    %1 = arith.addi %0, %arg1 : i32
    %c0_i32 = arith.constant 0 : i32
    %c0_i32_0 = arith.constant 0 : i32
    return %1, %c0_i32 : i32, i32
  }
  func.func @transform_1(%arg0: i32, %arg1: i32) -> (i32, i32) {
    %c0_i32 = arith.constant 0 : i32
    %c0_i32_0 = arith.constant 0 : i32
    %c0_i32_1 = arith.constant 0 : i32
    return %c0_i32, %c0_i32_0 : i32, i32
  }
  func.func @transform_2(%arg0: i32, %arg1: i32) -> (i32, i32) {
    %c0_i32 = arith.constant 0 : i32
    %c0_i32_0 = arith.constant 0 : i32
    %c0_i32_1 = arith.constant 0 : i32
    return %c0_i32, %c0_i32_0 : i32, i32
  }
  func.func @transform_3(%arg0: i32, %arg1: i32) -> (i32, i32) {
    %c1_i32 = arith.constant 1 : i32
    %0 = arith.muli %arg0, %c1_i32 : i32
    %1 = arith.addi %0, %arg1 : i32
    %c0_i32 = arith.constant 0 : i32
    %c0_i32_0 = arith.constant 0 : i32
    return %1, %c0_i32 : i32, i32
  }
  func.func @transform_4(%arg0: i32, %arg1: i32) -> (i32, i32, i32) {
    %c1_i32 = arith.constant 1 : i32
    %0 = arith.muli %arg0, %c1_i32 : i32
    %1 = arith.addi %0, %arg1 : i32
    %c0_i32 = arith.constant 0 : i32
    %c0_i32_0 = arith.constant 0 : i32
    %c0_i32_1 = arith.constant 0 : i32
    return %1, %c0_i32, %c0_i32_0 : i32, i32, i32
  }
  func.func @transform_5(%arg0: i32, %arg1: i32) -> (i32, i32, i32) {
    %c0_i32 = arith.constant 0 : i32
    %c0_i32_0 = arith.constant 0 : i32
    %c0_i32_1 = arith.constant 0 : i32
    return %arg0, %c0_i32, %c0_i32_0 : i32, i32, i32
  }
  func.func @transform_6(%arg0: i32, %arg1: i32) -> (i32, i32, i32) {
    %c1_i32 = arith.constant 1 : i32
    %0 = arith.muli %arg0, %c1_i32 : i32
    %1 = arith.addi %0, %arg1 : i32
    %c0_i32 = arith.constant 0 : i32
    %c0_i32_0 = arith.constant 0 : i32
    %c0_i32_1 = arith.constant 0 : i32
    return %1, %c0_i32, %c0_i32_0 : i32, i32, i32
  }
}

</mosaic_0001>

<llo_original>
// kernel: vector_quantizer_forward.1
$region0: #{vector_quantizer_forward.1}
  #allocation0 [shape = 'u32[]', space=smem, size = 0x4, offset = 0x4, fixed_abs, tag = 'smem constant byte address 0x4 - core index']
  #allocation1 [shape = 'u32[144,128]{1,0:T(1,128)}', space=vmem, size = 0x12000, scoped, tag = 'internal scratch']
  %s0 = inlined_call_operand.vmem [shape: f32[56,16], index: 0, kind: input, shape index: {}]
  %s1 = inlined_call_operand.vmem [shape: f32[32,16], index: 1, kind: input, shape index: {}]
  %s2 = inlined_call_operand.vmem [shape: f32[1,32], index: 2, kind: input, shape index: {}]
  %s3 = inlined_call_operand.vmem [shape: f32[56,16], index: 3, kind: output, shape index: {0}]
  %s4 = inlined_call_operand.vmem [shape: s32[1,1,56], index: 4, kind: output, shape index: {1}]
  %s5 = inlined_call_operand.vmem [shape: f32[1,1,32], index: 5, kind: output, shape index: {2}]
  %s6 = inlined_call_operand.hbm [shape: f32[1,1,1], index: 6, kind: output, shape index: {3}]
  %7 = xla_tuple %s3, %s4, %s5, %s6
  %s8 = sld [smem:[#allocation0]]
  $region58: #{vector_quantizer_forward.1} parent=0
    _
  %s10 = ssub.s32 1, %s8
  %s11 = scalar_select 0, %s10, %s8
  $region1: #{vector_quantizer_forward.1} parent=0
    #allocation2 [shape = 'u8[512]{0}', space=vmem, size = 0x400, scoped, tag = 'output window, operand 3, single buffered']
    #allocation3 [shape = 's32[1]{0}', space=sflag, size = 0x4, scoped, tag = 'scoped memory for vector_quantizer_forward.1']
    %12 = vsyncpa [#allocation3], 0
    // Predicated region
    $region2: #{vector_quantizer_forward.1} parent=1 // pred_check
      _
    $region3: #{vector_quantizer_forward.1} parent=1 // pred_check_branch
      %14 = sbr.rel (0) target = $region5
    $region4: #{vector_quantizer_forward.1} parent=1 // pred_region
      %s15 = sadd.s32 0, 0
      %s16 = smul.u32 7, %s15
      %p17 = scmp.lt.s32.totalorder %s16, 6
      %s18 = scalar_select %p17, %s16, 6
      %s19 = smul.addr %s18, 8
      %s20 = scalar_lea.vmem %s0, %s19
      %s21 = sadd.s32 0, 0
      %s22 = smul.u32 7, %s21
    $region5: #{vector_quantizer_forward.1} parent=1 // pred_fallthru
      _
    // Predicated region
    $region6: #{vector_quantizer_forward.1} parent=1 // pred_check
      _
    $region7: #{vector_quantizer_forward.1} parent=1 // pred_check_branch
      %24 = sbr.rel (0) target = $region9
    $region8: #{vector_quantizer_forward.1} parent=1 // pred_region
      _
    $region9: #{vector_quantizer_forward.1} parent=1 // pred_fallthru
      _
    // Predicated region
    $region10: #{vector_quantizer_forward.1} parent=1 // pred_check
      _
    $region11: #{vector_quantizer_forward.1} parent=1 // pred_check_branch
      %26 = sbr.rel (0) target = $region13
    $region12: #{vector_quantizer_forward.1} parent=1 // pred_region
      _
    $region13: #{vector_quantizer_forward.1} parent=1 // pred_fallthru
      _
    %s27 = sadd.s32 0, 0
    %s28 = smul.u32 7, %s27
    %p29 = scmp.lt.s32.totalorder %s28, 6
    %s30 = scalar_select %p29, %s28, 6
    %s31 = smul.addr %s30, 8
    %s32 = scalar_lea.vmem %s0, %s31
    %s33 = sadd.s32 0, 0
    %s34 = smul.u32 7, %s33
    %p35 = scmp.lt.s32.totalorder %s34, 6
    %s36 = scalar_select %p35, %s34, 6
    %s37 = smul.addr %s36, 8
    %s38 = scalar_lea.vmem %s3, %s37
    %s39 = sadd.s32 0, 0
    %p40 = scmp.lt.s32.totalorder %s39, 0
    %s41 = scalar_select %p40, %s39, 0
    %s42 = scalar_lea.vmem %s4, %s41
    %s43 = sadd.s32 0, 0
    %s44 = smul.u32 7, %s43
    %p45 = scmp.lt.s32.totalorder %s44, 6
    %s46 = scalar_select %p45, %s44, 6
    %s47 = smul.addr %s46, 8
    %s48 = scalar_lea.vmem %s0, %s47
    %s49 = sadd.s32 0, 0
    %s50 = smul.u32 7, %s49
    %s51 = sadd.s32 0, 0
    %s52 = smul.u32 7, %s51
    %p53 = scmp.lt.s32.totalorder %s52, 6
    %s54 = scalar_select %p53, %s52, 6
    %s55 = smul.addr %s54, 8
    %s56 = scalar_lea.vmem %s3, %s55
    %s57 = sadd.s32 0, 0
    %s58 = smul.u32 7, %s57
    %s59 = sadd.s32 0, 0
    %p60 = scmp.lt.s32.totalorder %s59, 0
    %s61 = scalar_select %p60, %s59, 0
    %s62 = scalar_lea.vmem %s4, %s61
    %s63 = sadd.s32 0, 0
    %s64 = sadd.s32 0, 0
    %s65 = sadd.s32 0, 0
    %p66 = scmp.eq.s32.totalorder 0, 0
    // Predicated region
    $region14: #{vector_quantizer_forward.1} parent=1 // pred_check
      %p67 = pneg %p66
    $region15: #{vector_quantizer_forward.1} parent=1 // pred_check_branch
      %69 = sbr.rel (%p67) target = $region17
    $region16: #{vector_quantizer_forward.1} parent=1 // pred_region
      %vm70 = vcmask 253952
      %71 = vst.msk [vmem:[%s5] sm:$0x1] %vm70, 0.0
    $region17: #{vector_quantizer_forward.1} parent=1 // pred_fallthru
      _
    %v72 = vld [vmem:[%s48] sm:$0xff]
    %v73 = vld [vmem:[%s48 + $0x8] sm:$0xff]
    %v74 = vld [vmem:[%s48 + $0x10] sm:$0xff]
    %v75 = vld [vmem:[%s48 + $0x18] sm:$0xff]
    %v76 = vld [vmem:[%s48 + $0x20] sm:$0xff]
    %v77 = vld [vmem:[%s48 + $0x28] sm:$0xff]
    %v78 = vld [vmem:[%s48 + $0x30] sm:$0xff]
    %v79 = vld [vmem:[%s1] sm:$0xff]
    %v80 = vld [vmem:[%s1 + $0x8] sm:$0xff]
    %v81 = vld [vmem:[%s1 + $0x10] sm:$0xff]
    %v82 = vld [vmem:[%s1 + $0x18] sm:$0xff]
    %vm83 = vcmask 130048
    %v85 = vsel %vm83, %v72, 0
    %v88 = vsel %vm83, %v73, 0
    %v91 = vsel %vm83, %v74, 0
    %v94 = vsel %vm83, %v75, 0
    %v97 = vsel %vm83, %v76, 0
    %v100 = vsel %vm83, %v77, 0
    %v103 = vsel %vm83, %v78, 0
    %v106 = vsel %vm83, %v79, 0
    %v109 = vsel %vm83, %v80, 0
    %v112 = vsel %vm83, %v81, 0
    %v115 = vsel %vm83, %v82, 0
    %117 = vmatprep.subr.mxu0 0.0
    %118 = vmatpush1.xpose.msra.mxu0 %v106
    %119 = vmatprep.subr.mxu0 0.0
    %120 = vmatpush1.xpose.msra.mxu0 %v109
    %121 = vmatprep.subr.mxu0 0.0
    %122 = vmatpush1.xpose.msra.mxu0 %v112
    %123 = vmatprep.subr.mxu0 0.0
    %124 = vmatpush1.xpose.msra.mxu0 %v115
    %125 = vmatprep.subr.mxu0 0.0
    %126 = vmatpush1.xpose.msra.mxu0 0.0
    %127 = vmatprep.subr.mxu0 0.0
    %128 = vmatpush1.xpose.msra.mxu0 0.0
    %129 = vmatprep.subr.mxu0 0.0
    %130 = vmatpush1.xpose.msra.mxu0 0.0
    %131 = vmatprep.subr.mxu0 0.0
    %132 = vmatpush1.xpose.msra.mxu0 0.0
    %133 = vmatprep.subr.mxu0 0.0
    %134 = vmatpush1.xpose.msra.mxu0 0.0
    %135 = vmatprep.subr.mxu0 0.0
    %136 = vmatpush1.xpose.msra.mxu0 0.0
    %137 = vmatprep.subr.mxu0 0.0
    %138 = vmatpush1.xpose.msra.mxu0 0.0
    %139 = vmatprep.subr.mxu0 0.0
    %140 = vmatpush1.xpose.msra.mxu0 0.0
    %141 = vmatprep.subr.mxu0 0.0
    %142 = vmatpush1.xpose.msra.mxu0 0.0
    %143 = vmatprep.subr.mxu0 0.0
    %144 = vmatpush1.xpose.msra.mxu0 0.0
    %145 = vmatprep.subr.mxu0 0.0
    %146 = vmatpush1.xpose.msra.mxu0 0.0
    %147 = vmatprep.subr.mxu0 0.0
    %148 = vmatpush1.xpose.msra.mxu0 0.0
    %149 = vmatprep.subr.mxu0 0.0
    %150 = vmatpush1.xpose.msra.mxu0 0.0
    %151 = vmatprep.subr.mxu0 0.0
    %152 = vmatpush1.xpose.msra.mxu0 0.0
    %153 = vmatprep.subr.mxu0 0.0
    %154 = vmatpush1.xpose.msra.mxu0 0.0
    %155 = vmatprep.subr.mxu0 0.0
    %156 = vmatpush1.xpose.msra.mxu0 0.0
    %157 = vmatprep.subr.mxu0 0.0
    %158 = vmatpush1.xpose.msra.mxu0 0.0
    %159 = vmatprep.subr.mxu0 0.0
    %160 = vmatpush1.xpose.msra.mxu0 0.0
    %161 = vmatprep.subr.mxu0 0.0
    %162 = vmatpush1.xpose.msra.mxu0 0.0
    %163 = vmatprep.subr.mxu0 0.0
    %164 = vmatpush1.xpose.msra.mxu0 0.0
    %165 = vmatprep.subr.mxu0 0.0
    %166 = vmatpush1.xpose.msra.mxu0 0.0
    %167 = vmatprep.subr.mxu0 0.0
    %168 = vmatpush1.xpose.msra.mxu0 0.0
    %169 = vmatprep.subr.mxu0 0.0
    %170 = vmatpush1.xpose.msra.mxu0 0.0
    %171 = vmatprep.subr.mxu0 0.0
    %172 = vmatpush1.xpose.msra.mxu0 0.0
    %173 = vmatprep.subr.mxu0 0.0
    %174 = vmatpush1.xpose.msra.mxu0 0.0
    %175 = vmatprep.subr.mxu0 0.0
    %176 = vmatpush1.xpose.msra.mxu0 0.0
    %177 = vmatprep.subr.mxu0 0.0
    %178 = vmatpush1.xpose.msra.mxu0 0.0
    %179 = vmatprep.subr.mxu0 0.0
    %180 = vmatpush1.xpose.msra.mxu0 0.0
    %181 = vmatprep.mubr.f32.mxu0 0.0
    %182 = vmatmul.mubr.f32.gmra.mrb[0].mxu0 %v85
    %v183 = vpop.f32.mrb[0].mxu0
    %v184 = vadd.f32 0.0, %v183
    %v185 = vpop.f32.mrb[0].mxu0
    %186 = vmatprep.mubr.f32.mxu0 0.0
    %187 = vmatmul.mubr.f32.gmra.mrb[0].mxu0 %v88
    %v188 = vpop.f32.mrb[0].mxu0
    %v189 = vadd.f32 0.0, %v188
    %v190 = vpop.f32.mrb[0].mxu0
    %191 = vmatprep.mubr.f32.mxu0 0.0
    %192 = vmatmul.mubr.f32.gmra.mrb[0].mxu0 %v91
    %v193 = vpop.f32.mrb[0].mxu0
    %v194 = vadd.f32 0.0, %v193
    %v195 = vpop.f32.mrb[0].mxu0
    %196 = vmatprep.mubr.f32.mxu0 0.0
    %197 = vmatmul.mubr.f32.gmra.mrb[0].mxu0 %v94
    %v198 = vpop.f32.mrb[0].mxu0
    %v199 = vadd.f32 0.0, %v198
    %v200 = vpop.f32.mrb[0].mxu0
    %201 = vmatprep.mubr.f32.mxu0 0.0
    %202 = vmatmul.mubr.f32.gmra.mrb[0].mxu0 %v97
    %v203 = vpop.f32.mrb[0].mxu0
    %v204 = vadd.f32 0.0, %v203
    %v205 = vpop.f32.mrb[0].mxu0
    %206 = vmatprep.mubr.f32.mxu0 0.0
    %207 = vmatmul.mubr.f32.gmra.mrb[0].mxu0 %v100
    %v208 = vpop.f32.mrb[0].mxu0
    %v209 = vadd.f32 0.0, %v208
    %v210 = vpop.f32.mrb[0].mxu0
    %211 = vmatprep.mubr.f32.mxu0 0.0
    %212 = vmatmul.mubr.f32.gmra.mrb[0].mxu0 %v103
    %v213 = vpop.f32.mrb[0].mxu0
    %v214 = vadd.f32 0.0, %v213
    %v215 = vpop.f32.mrb[0].mxu0
    %216 = vdwg.mxu0
    %v217 = vld [vmem:[%s2] sm:$0x1]
    %v219 = vlaneseq
    %v220 = vshrl.u32 %v219, 7
    %v221 = vsub.s32 0, %v220
    %v222 = vrot.slane %v217, %v221
    %v224 = vsub.f32 %v222, %v184
    %v225 = vsub.f32 %v222, %v189
    %v226 = vsub.f32 %v222, %v194
    %v227 = vsub.f32 %v222, %v199
    %v228 = vsub.f32 %v222, %v204
    %v229 = vsub.f32 %v222, %v209
    %v230 = vsub.f32 %v222, %v214
    %vm231 = vcmask 261120
    %v232 = vsel %vm231, %v224, inf
    %233 = vmin.xlane.f32.xlu0 %v232
    %v234 = vpop.xlane.xlu0 %233
    %v235 = vsel %vm231, %v225, inf
    %236 = vmin.xlane.f32.xlu0 %v235
    %v237 = vpop.xlane.xlu0 %236
    %v238 = vsel %vm231, %v226, inf
    %239 = vmin.xlane.f32.xlu0 %v238
    %v240 = vpop.xlane.xlu0 %239
    %v241 = vsel %vm231, %v227, inf
    %242 = vmin.xlane.f32.xlu0 %v241
    %v243 = vpop.xlane.xlu0 %242
    %v244 = vsel %vm231, %v228, inf
    %245 = vmin.xlane.f32.xlu0 %v244
    %v246 = vpop.xlane.xlu0 %245
    %v247 = vsel %vm231, %v229, inf
    %248 = vmin.xlane.f32.xlu0 %v247
    %v249 = vpop.xlane.xlu0 %248
    %v250 = vsel %vm231, %v230, inf
    %251 = vmin.xlane.f32.xlu0 %v250
    %v252 = vpop.xlane.xlu0 %251
    %v253 = vlaneseq
    %v254 = vand.u32 %v253, 127
    %vm255 = vcmp.le.f32.partialorder %v224, %v234
    %vm256 = vcmp.le.f32.partialorder %v225, %v237
    %vm257 = vcmp.le.f32.partialorder %v226, %v240
    %vm258 = vcmp.le.f32.partialorder %v227, %v243
    %vm259 = vcmp.le.f32.partialorder %v228, %v246
    %vm260 = vcmp.le.f32.partialorder %v229, %v249
    %vm261 = vcmp.le.f32.partialorder %v230, %v252
    %v262 = vsel %vm255, %v254, 32
    %v263 = vsel %vm256, %v254, 32
    %v264 = vsel %vm257, %v254, 32
    %v265 = vsel %vm258, %v254, 32
    %v266 = vsel %vm259, %v254, 32
    %v267 = vsel %vm260, %v254, 32
    %v268 = vsel %vm261, %v254, 32
    %v269 = vsel %vm231, %v262, 2147483647
    %v270 = vand.u32 %v269, 65535
    %v271 = vshra.s32 %v269, 16
    %v272 = vcvt.s32.f32 %v270
    %v273 = vcvt.s32.f32 %v271
    %274 = vmin.xlane.f32.xlu0 %v273
    %v275 = vpop.xlane.xlu0 %274
    %vm276 = vcmp.eq.f32.partialorder %v273, %v275
    %v277 = vsel %vm276, %v272, inf
    %278 = vmin.xlane.f32.xlu0 %v277
    %v279 = vpop.xlane.xlu0 %278
    %v280 = vcvt.f32.s32 %v279
    %v281 = vcvt.f32.s32 %v275
    %v282 = vshll.u32 %v281, 16
    %v283 = vadd.s32 %v282, %v280
    %v284 = vsel %vm231, %v263, 2147483647
    %v285 = vand.u32 %v284, 65535
    %v286 = vshra.s32 %v284, 16
    %v287 = vcvt.s32.f32 %v285
    %v288 = vcvt.s32.f32 %v286
    %289 = vmin.xlane.f32.xlu0 %v288
    %v290 = vpop.xlane.xlu0 %289
    %vm291 = vcmp.eq.f32.partialorder %v288, %v290
    %v292 = vsel %vm291, %v287, inf
    %293 = vmin.xlane.f32.xlu0 %v292
    %v294 = vpop.xlane.xlu0 %293
    %v295 = vcvt.f32.s32 %v294
    %v296 = vcvt.f32.s32 %v290
    %v297 = vshll.u32 %v296, 16
    %v298 = vadd.s32 %v297, %v295
    %v299 = vsel %vm231, %v264, 2147483647
    %v300 = vand.u32 %v299, 65535
    %v301 = vshra.s32 %v299, 16
    %v302 = vcvt.s32.f32 %v300
    %v303 = vcvt.s32.f32 %v301
    %304 = vmin.xlane.f32.xlu0 %v303
    %v305 = vpop.xlane.xlu0 %304
    %vm306 = vcmp.eq.f32.partialorder %v303, %v305
    %v307 = vsel %vm306, %v302, inf
    %308 = vmin.xlane.f32.xlu0 %v307
    %v309 = vpop.xlane.xlu0 %308
    %v310 = vcvt.f32.s32 %v309
    %v311 = vcvt.f32.s32 %v305
    %v312 = vshll.u32 %v311, 16
    %v313 = vadd.s32 %v312, %v310
    %v314 = vsel %vm231, %v265, 2147483647
    %v315 = vand.u32 %v314, 65535
    %v316 = vshra.s32 %v314, 16
    %v317 = vcvt.s32.f32 %v315
    %v318 = vcvt.s32.f32 %v316
    %319 = vmin.xlane.f32.xlu0 %v318
    %v320 = vpop.xlane.xlu0 %319
    %vm321 = vcmp.eq.f32.partialorder %v318, %v320
    %v322 = vsel %vm321, %v317, inf
    %323 = vmin.xlane.f32.xlu0 %v322
    %v324 = vpop.xlane.xlu0 %323
    %v325 = vcvt.f32.s32 %v324
    %v326 = vcvt.f32.s32 %v320
    %v327 = vshll.u32 %v326, 16
    %v328 = vadd.s32 %v327, %v325
    %v329 = vsel %vm231, %v266, 2147483647
    %v330 = vand.u32 %v329, 65535
    %v331 = vshra.s32 %v329, 16
    %v332 = vcvt.s32.f32 %v330
    %v333 = vcvt.s32.f32 %v331
    %334 = vmin.xlane.f32.xlu0 %v333
    %v335 = vpop.xlane.xlu0 %334
    %vm336 = vcmp.eq.f32.partialorder %v333, %v335
    %v337 = vsel %vm336, %v332, inf
    %338 = vmin.xlane.f32.xlu0 %v337
    %v339 = vpop.xlane.xlu0 %338
    %v340 = vcvt.f32.s32 %v339
    %v341 = vcvt.f32.s32 %v335
    %v342 = vshll.u32 %v341, 16
    %v343 = vadd.s32 %v342, %v340
    %v344 = vsel %vm231, %v267, 2147483647
    %v345 = vand.u32 %v344, 65535
    %v346 = vshra.s32 %v344, 16
    %v347 = vcvt.s32.f32 %v345
    %v348 = vcvt.s32.f32 %v346
    %349 = vmin.xlane.f32.xlu0 %v348
    %v350 = vpop.xlane.xlu0 %349
    %vm351 = vcmp.eq.f32.partialorder %v348, %v350
    %v352 = vsel %vm351, %v347, inf
    %353 = vmin.xlane.f32.xlu0 %v352
    %v354 = vpop.xlane.xlu0 %353
    %v355 = vcvt.f32.s32 %v354
    %v356 = vcvt.f32.s32 %v350
    %v357 = vshll.u32 %v356, 16
    %v358 = vadd.s32 %v357, %v355
    %v359 = vsel %vm231, %v268, 2147483647
    %v360 = vand.u32 %v359, 65535
    %v361 = vshra.s32 %v359, 16
    %v362 = vcvt.s32.f32 %v360
    %v363 = vcvt.s32.f32 %v361
    %364 = vmin.xlane.f32.xlu0 %v363
    %v365 = vpop.xlane.xlu0 %364
    %vm366 = vcmp.eq.f32.partialorder %v363, %v365
    %v367 = vsel %vm366, %v362, inf
    %368 = vmin.xlane.f32.xlu0 %v367
    %v369 = vpop.xlane.xlu0 %368
    %v370 = vcvt.f32.s32 %v369
    %v371 = vcvt.f32.s32 %v365
    %v372 = vshll.u32 %v371, 16
    %v373 = vadd.s32 %v372, %v370
    %vm374 = vcmp.eq.s32.totalorder %v254, %v283
    %vm375 = vcmp.eq.s32.totalorder %v254, %v298
    %vm376 = vcmp.eq.s32.totalorder %v254, %v313
    %vm377 = vcmp.eq.s32.totalorder %v254, %v328
    %vm378 = vcmp.eq.s32.totalorder %v254, %v343
    %vm379 = vcmp.eq.s32.totalorder %v254, %v358
    %vm380 = vcmp.eq.s32.totalorder %v254, %v373
    %v381 = vsel %vm374, 1, 0
    %v382 = vsel %vm375, 1, 0
    %v383 = vsel %vm376, 1, 0
    %v384 = vsel %vm377, 1, 0
    %v385 = vsel %vm378, 1, 0
    %v386 = vsel %vm379, 1, 0
    %v387 = vsel %vm380, 1, 0
    %v388 = vcvt.s32.f32 %v381
    %v389 = vcvt.s32.f32 %v382
    %v390 = vcvt.s32.f32 %v383
    %v391 = vcvt.s32.f32 %v384
    %v392 = vcvt.s32.f32 %v385
    %v393 = vcvt.s32.f32 %v386
    %v394 = vcvt.s32.f32 %v387
    %v396 = vsel %vm231, %v388, 0
    %v399 = vsel %vm231, %v389, 0
    %v402 = vsel %vm231, %v390, 0
    %v405 = vsel %vm231, %v391, 0
    %v408 = vsel %vm231, %v392, 0
    %v411 = vsel %vm231, %v393, 0
    %v414 = vsel %vm231, %v394, 0
    %416 = vmatprep.subr.mxu0 0.0
    %417 = vmatpush1.msra.mxu0 %v79
    %418 = vmatprep.subr.mxu0 0.0
    %419 = vmatpush1.msra.mxu0 %v80
    %420 = vmatprep.subr.mxu0 0.0
    %421 = vmatpush1.msra.mxu0 %v81
    %422 = vmatprep.subr.mxu0 0.0
    %423 = vmatpush1.msra.mxu0 %v82
    %424 = vmatprep.subr.mxu0 0.0
    %425 = vmatpush1.msra.mxu0 0.0
    %426 = vmatprep.subr.mxu0 0.0
    %427 = vmatpush1.msra.mxu0 0.0
    %428 = vmatprep.subr.mxu0 0.0
    %429 = vmatpush1.msra.mxu0 0.0
    %430 = vmatprep.subr.mxu0 0.0
    %431 = vmatpush1.msra.mxu0 0.0
    %432 = vmatprep.subr.mxu0 0.0
    %433 = vmatpush1.msra.mxu0 0.0
    %434 = vmatprep.subr.mxu0 0.0
    %435 = vmatpush1.msra.mxu0 0.0
    %436 = vmatprep.subr.mxu0 0.0
    %437 = vmatpush1.msra.mxu0 0.0
    %438 = vmatprep.subr.mxu0 0.0
    %439 = vmatpush1.msra.mxu0 0.0
    %440 = vmatprep.subr.mxu0 0.0
    %441 = vmatpush1.msra.mxu0 0.0
    %442 = vmatprep.subr.mxu0 0.0
    %443 = vmatpush1.msra.mxu0 0.0
    %444 = vmatprep.subr.mxu0 0.0
    %445 = vmatpush1.msra.mxu0 0.0
    %446 = vmatprep.subr.mxu0 0.0
    %447 = vmatpush1.msra.mxu0 0.0
    %448 = vmatprep.subr.mxu0 0.0
    %449 = vmatpush1.msra.mxu0 0.0
    %450 = vmatprep.subr.mxu0 0.0
    %451 = vmatpush1.msra.mxu0 0.0
    %452 = vmatprep.subr.mxu0 0.0
    %453 = vmatpush1.msra.mxu0 0.0
    %454 = vmatprep.subr.mxu0 0.0
    %455 = vmatpush1.msra.mxu0 0.0
    %456 = vmatprep.subr.mxu0 0.0
    %457 = vmatpush1.msra.mxu0 0.0
    %458 = vmatprep.subr.mxu0 0.0
    %459 = vmatpush1.msra.mxu0 0.0
    %460 = vmatprep.subr.mxu0 0.0
    %461 = vmatpush1.msra.mxu0 0.0
    %462 = vmatprep.subr.mxu0 0.0
    %463 = vmatpush1.msra.mxu0 0.0
    %464 = vmatprep.subr.mxu0 0.0
    %465 = vmatpush1.msra.mxu0 0.0
    %466 = vmatprep.subr.mxu0 0.0
    %467 = vmatpush1.msra.mxu0 0.0
    %468 = vmatprep.subr.mxu0 0.0
    %469 = vmatpush1.msra.mxu0 0.0
    %470 = vmatprep.subr.mxu0 0.0
    %471 = vmatpush1.msra.mxu0 0.0
    %472 = vmatprep.subr.mxu0 0.0
    %473 = vmatpush1.msra.mxu0 0.0
    %474 = vmatprep.subr.mxu0 0.0
    %475 = vmatpush1.msra.mxu0 0.0
    %476 = vmatprep.subr.mxu0 0.0
    %477 = vmatpush1.msra.mxu0 0.0
    %478 = vmatprep.subr.mxu0 0.0
    %479 = vmatpush1.msra.mxu0 0.0
    %480 = vmatprep.mubr.f32.mxu0 0.0
    %481 = vmatmul.mubr.f32.gmra.mrb[0].mxu0 %v396
    %v482 = vpop.f32.mrb[0].mxu0
    %v483 = vadd.f32 0.0, %v482
    %v484 = vpop.f32.mrb[0].mxu0
    %485 = vmatprep.mubr.f32.mxu0 0.0
    %486 = vmatmul.mubr.f32.gmra.mrb[0].mxu0 %v399
    %v487 = vpop.f32.mrb[0].mxu0
    %v488 = vadd.f32 0.0, %v487
    %v489 = vpop.f32.mrb[0].mxu0
    %490 = vmatprep.mubr.f32.mxu0 0.0
    %491 = vmatmul.mubr.f32.gmra.mrb[0].mxu0 %v402
    %v492 = vpop.f32.mrb[0].mxu0
    %v493 = vadd.f32 0.0, %v492
    %v494 = vpop.f32.mrb[0].mxu0
    %495 = vmatprep.mubr.f32.mxu0 0.0
    %496 = vmatmul.mubr.f32.gmra.mrb[0].mxu0 %v405
    %v497 = vpop.f32.mrb[0].mxu0
    %v498 = vadd.f32 0.0, %v497
    %v499 = vpop.f32.mrb[0].mxu0
    %500 = vmatprep.mubr.f32.mxu0 0.0
    %501 = vmatmul.mubr.f32.gmra.mrb[0].mxu0 %v408
    %v502 = vpop.f32.mrb[0].mxu0
    %v503 = vadd.f32 0.0, %v502
    %v504 = vpop.f32.mrb[0].mxu0
    %505 = vmatprep.mubr.f32.mxu0 0.0
    %506 = vmatmul.mubr.f32.gmra.mrb[0].mxu0 %v411
    %v507 = vpop.f32.mrb[0].mxu0
    %v508 = vadd.f32 0.0, %v507
    %v509 = vpop.f32.mrb[0].mxu0
    %510 = vmatprep.mubr.f32.mxu0 0.0
    %511 = vmatmul.mubr.f32.gmra.mrb[0].mxu0 %v414
    %v512 = vpop.f32.mrb[0].mxu0
    %v513 = vadd.f32 0.0, %v512
    %v514 = vpop.f32.mrb[0].mxu0
    %515 = vdwg.mxu0
    %516 = vst.msk [vmem:[%s56] sm:$0xff] %vm83, %v483
    %517 = vst.msk [vmem:[%s56 + $0x8] sm:$0xff] %vm83, %v488
    %518 = vst.msk [vmem:[%s56 + $0x10] sm:$0xff] %vm83, %v493
    %519 = vst.msk [vmem:[%s56 + $0x18] sm:$0xff] %vm83, %v498
    %520 = vst.msk [vmem:[%s56 + $0x20] sm:$0xff] %vm83, %v503
    %521 = vst.msk [vmem:[%s56 + $0x28] sm:$0xff] %vm83, %v508
    %522 = vst.msk [vmem:[%s56 + $0x30] sm:$0xff] %vm83, %v513
    %v523 = vcvt.s32.f32 %v254
    %v525 = vsel %vm231, %v523, 0
    %527 = vmatprep.subr.mxu0 0.0
    %528 = vmatpush1.xpose.msra.mxu0 %v396
    %529 = vmatprep.subr.mxu0 0.0
    %530 = vmatpush1.xpose.msra.mxu0 %v399
    %531 = vmatprep.subr.mxu0 0.0
    %532 = vmatpush1.xpose.msra.mxu0 %v402
    %533 = vmatprep.subr.mxu0 0.0
    %534 = vmatpush1.xpose.msra.mxu0 %v405
    %535 = vmatprep.subr.mxu0 0.0
    %536 = vmatpush1.xpose.msra.mxu0 %v408
    %537 = vmatprep.subr.mxu0 0.0
    %538 = vmatpush1.xpose.msra.mxu0 %v411
    %539 = vmatprep.subr.mxu0 0.0
    %540 = vmatpush1.xpose.msra.mxu0 %v414
    %541 = vmatprep.subr.mxu0 0.0
    %542 = vmatpush1.xpose.msra.mxu0 0.0
    %543 = vmatprep.subr.mxu0 0.0
    %544 = vmatpush1.xpose.msra.mxu0 0.0
    %545 = vmatprep.subr.mxu0 0.0
    %546 = vmatpush1.xpose.msra.mxu0 0.0
    %547 = vmatprep.subr.mxu0 0.0
    %548 = vmatpush1.xpose.msra.mxu0 0.0
    %549 = vmatprep.subr.mxu0 0.0
    %550 = vmatpush1.xpose.msra.mxu0 0.0
    %551 = vmatprep.subr.mxu0 0.0
    %552 = vmatpush1.xpose.msra.mxu0 0.0
    %553 = vmatprep.subr.mxu0 0.0
    %554 = vmatpush1.xpose.msra.mxu0 0.0
    %555 = vmatprep.subr.mxu0 0.0
    %556 = vmatpush1.xpose.msra.mxu0 0.0
    %557 = vmatprep.subr.mxu0 0.0
    %558 = vmatpush1.xpose.msra.mxu0 0.0
    %559 = vmatprep.subr.mxu0 0.0
    %560 = vmatpush1.xpose.msra.mxu0 0.0
    %561 = vmatprep.subr.mxu0 0.0
    %562 = vmatpush1.xpose.msra.mxu0 0.0
    %563 = vmatprep.subr.mxu0 0.0
    %564 = vmatpush1.xpose.msra.mxu0 0.0
    %565 = vmatprep.subr.mxu0 0.0
    %566 = vmatpush1.xpose.msra.mxu0 0.0
    %567 = vmatprep.subr.mxu0 0.0
    %568 = vmatpush1.xpose.msra.mxu0 0.0
    %569 = vmatprep.subr.mxu0 0.0
    %570 = vmatpush1.xpose.msra.mxu0 0.0
    %571 = vmatprep.subr.mxu0 0.0
    %572 = vmatpush1.xpose.msra.mxu0 0.0
    %573 = vmatprep.subr.mxu0 0.0
    %574 = vmatpush1.xpose.msra.mxu0 0.0
    %575 = vmatprep.subr.mxu0 0.0
    %576 = vmatpush1.xpose.msra.mxu0 0.0
    %577 = vmatprep.subr.mxu0 0.0
    %578 = vmatpush1.xpose.msra.mxu0 0.0
    %579 = vmatprep.subr.mxu0 0.0
    %580 = vmatpush1.xpose.msra.mxu0 0.0
    %581 = vmatprep.subr.mxu0 0.0
    %582 = vmatpush1.xpose.msra.mxu0 0.0
    %583 = vmatprep.subr.mxu0 0.0
    %584 = vmatpush1.xpose.msra.mxu0 0.0
    %585 = vmatprep.subr.mxu0 0.0
    %586 = vmatpush1.xpose.msra.mxu0 0.0
    %587 = vmatprep.subr.mxu0 0.0
    %588 = vmatpush1.xpose.msra.mxu0 0.0
    %589 = vmatprep.subr.mxu0 0.0
    %590 = vmatpush1.xpose.msra.mxu0 0.0
    %591 = vmatprep.mubr.f32.mxu0 0.0
    %592 = vmatmul.mubr.f32.gmra.mrb[0].mxu0 %v525
    %v593 = vpop.f32.mrb[0].mxu0
    %v594 = vadd.f32 0.0, %v593
    %v595 = vpop.f32.mrb[0].mxu0
    %596 = vdwg.mxu0
    %v597 = vcvt.f32.s32.to.zero.pseudo %v594
    %vm598 = vcmask 450560
    %599 = vst.msk [vmem:[%s62] sm:$0x1] %vm598, %v597
    %v600 = vsub.f32 %v483, %v72
    %v601 = vsub.f32 %v488, %v73
    %v602 = vsub.f32 %v493, %v74
    %v603 = vsub.f32 %v498, %v75
    %v604 = vsub.f32 %v503, %v76
    %v605 = vsub.f32 %v508, %v77
    %v606 = vsub.f32 %v513, %v78
    %s607 = sadd.s32 %s65, 1
    %s608 = smul.u32 %s607, 56
    %p609 = scmp.gt.s32.totalorder %s608, 50
    %p610 = scmp.le.s32.totalorder %s608, 50
    // Predicated region
    $region18: #{vector_quantizer_forward.1} parent=1 // pred_check
      %p611 = pneg %p610
    $region19: #{vector_quantizer_forward.1} parent=1 // pred_check_branch
      %613 = sbr.rel (%p611) target = $region21
    $region20: #{vector_quantizer_forward.1} parent=1 // pred_region
      %vm614 = vcmask 457728
      %v616 = vsel %vm614, 1.0, 0
      %618 = vmatprep.subr.mxu0 0.0
      %619 = vmatpush1.msra.mxu0 %v388
      %620 = vmatprep.subr.mxu0 0.0
      %621 = vmatpush1.msra.mxu0 %v389
      %622 = vmatprep.subr.mxu0 0.0
      %623 = vmatpush1.msra.mxu0 %v390
      %624 = vmatprep.subr.mxu0 0.0
      %625 = vmatpush1.msra.mxu0 %v391
      %626 = vmatprep.subr.mxu0 0.0
      %627 = vmatpush1.msra.mxu0 %v392
      %628 = vmatprep.subr.mxu0 0.0
      %629 = vmatpush1.msra.mxu0 %v393
      %630 = vmatprep.subr.mxu0 0.0
      %631 = vmatpush1.msra.mxu0 %v394
      %632 = vmatprep.subr.mxu0 0.0
      %633 = vmatpush1.msra.mxu0 0.0
      %634 = vmatprep.subr.mxu0 0.0
      %635 = vmatpush1.msra.mxu0 0.0
      %636 = vmatprep.subr.mxu0 0.0
      %637 = vmatpush1.msra.mxu0 0.0
      %638 = vmatprep.subr.mxu0 0.0
      %639 = vmatpush1.msra.mxu0 0.0
      %640 = vmatprep.subr.mxu0 0.0
      %641 = vmatpush1.msra.mxu0 0.0
      %642 = vmatprep.subr.mxu0 0.0
      %643 = vmatpush1.msra.mxu0 0.0
      %644 = vmatprep.subr.mxu0 0.0
      %645 = vmatpush1.msra.mxu0 0.0
      %646 = vmatprep.subr.mxu0 0.0
      %647 = vmatpush1.msra.mxu0 0.0
      %648 = vmatprep.subr.mxu0 0.0
      %649 = vmatpush1.msra.mxu0 0.0
      %650 = vmatprep.subr.mxu0 0.0
      %651 = vmatpush1.msra.mxu0 0.0
      %652 = vmatprep.subr.mxu0 0.0
      %653 = vmatpush1.msra.mxu0 0.0
      %654 = vmatprep.subr.mxu0 0.0
      %655 = vmatpush1.msra.mxu0 0.0
      %656 = vmatprep.subr.mxu0 0.0
      %657 = vmatpush1.msra.mxu0 0.0
      %658 = vmatprep.subr.mxu0 0.0
      %659 = vmatpush1.msra.mxu0 0.0
      %660 = vmatprep.subr.mxu0 0.0
      %661 = vmatpush1.msra.mxu0 0.0
      %662 = vmatprep.subr.mxu0 0.0
      %663 = vmatpush1.msra.mxu0 0.0
      %664 = vmatprep.subr.mxu0 0.0
      %665 = vmatpush1.msra.mxu0 0.0
      %666 = vmatprep.subr.mxu0 0.0
      %667 = vmatpush1.msra.mxu0 0.0
      %668 = vmatprep.subr.mxu0 0.0
      %669 = vmatpush1.msra.mxu0 0.0
      %670 = vmatprep.subr.mxu0 0.0
      %671 = vmatpush1.msra.mxu0 0.0
      %672 = vmatprep.subr.mxu0 0.0
      %673 = vmatpush1.msra.mxu0 0.0
      %674 = vmatprep.subr.mxu0 0.0
      %675 = vmatpush1.msra.mxu0 0.0
      %676 = vmatprep.subr.mxu0 0.0
      %677 = vmatpush1.msra.mxu0 0.0
      %678 = vmatprep.subr.mxu0 0.0
      %679 = vmatpush1.msra.mxu0 0.0
      %680 = vmatprep.subr.mxu0 0.0
      %681 = vmatpush1.msra.mxu0 0.0
      %682 = vmatprep.mubr.f32.mxu0 0.0
      %683 = vmatmul.mubr.f32.gmra.mrb[0].mxu0 %v616
      %v684 = vpop.f32.mrb[0].mxu0
      %v685 = vadd.f32 0.0, %v684
      %v686 = vpop.f32.mrb[0].mxu0
      %687 = vdwg.mxu0
      %v688 = vld [vmem:[%s5] sm:$0x1]
      %v689 = vadd.f32 %v688, %v685
      %vm690 = vcmask 253952
      %691 = vst.msk [vmem:[%s5] sm:$0x1] %vm690, %v689
      %v692 = vmul.f32 %v600, %v600
      %v693 = vmul.f32 %v601, %v601
      %v694 = vmul.f32 %v602, %v602
      %v695 = vmul.f32 %v603, %v603
      %v696 = vmul.f32 %v604, %v604
      %v697 = vmul.f32 %v605, %v605
      %v698 = vmul.f32 %v606, %v606
      %v699 = vsel %vm83, %v692, 0.0
      %v700 = vsel %vm83, %v693, 0.0
      %v701 = vadd.f32 %v699, %v700
      %v702 = vsel %vm83, %v694, 0.0
      %v703 = vadd.f32 %v701, %v702
      %v704 = vsel %vm83, %v695, 0.0
      %v705 = vadd.f32 %v703, %v704
      %v706 = vsel %vm83, %v696, 0.0
      %v707 = vadd.f32 %v705, %v706
      %v708 = vsel %vm83, %v697, 0.0
      %v709 = vadd.f32 %v707, %v708
      %v710 = vsel %vm83, %v698, 0.0
      %v711 = vadd.f32 %v709, %v710
      %712 = vadd.xlane.f32.xlu0 %v711
      %v713 = vpop.xlane.xlu0 %712
      %v714 = vrot.slane %v713, 4
      %v715 = vadd.f32 %v713, %v714
      %v716 = vrot.slane %v715, 2
      %v717 = vadd.f32 %v715, %v716
      %v718 = vrot.slane %v717, 1
      %v719 = vadd.f32 %v717, %v718
      %s720 = vtos %v719
      %v721 = vstv %s720
      %vm722 = vcmask 0
      %723 = vst.msk [vmem:[#allocation2] sm:$0x1] %vm722, %v721
    $region21: #{vector_quantizer_forward.1} parent=1 // pred_fallthru
      _
    // Predicated region
    $region22: #{vector_quantizer_forward.1} parent=1 // pred_check
      %p724 = pneg %p609
    $region23: #{vector_quantizer_forward.1} parent=1 // pred_check_branch
      %726 = sbr.rel (%p724) target = $region25
    $region24: #{vector_quantizer_forward.1} parent=1 // pred_region
      %s727 = smul.u32 %s65, 56
      %v728 = vlaneseq
      %v729 = vshrl.u32 %v728, 7
      %v730 = vadd.s32 %v729, 8
      %v731 = vadd.s32 %v729, 16
      %v732 = vadd.s32 %v729, 24
      %v733 = vadd.s32 %v729, 32
      %v734 = vadd.s32 %v729, 40
      %v735 = vadd.s32 %v729, 48
      %v736 = vstv %s727
      %v737 = vadd.s32 %v736, %v254
      %vm738 = vcmp.lt.s32.totalorder %v737, 50
      %v739 = vsel %vm738, 1, 0
      %v740 = vcvt.s32.f32 %v739
      %v741 = vadd.s32 %v736, %v729
      %v742 = vadd.s32 %v736, %v730
      %v743 = vadd.s32 %v736, %v731
      %v744 = vadd.s32 %v736, %v732
      %v745 = vadd.s32 %v736, %v733
      %v746 = vadd.s32 %v736, %v734
      %v747 = vadd.s32 %v736, %v735
      %vm748 = vcmp.lt.s32.totalorder %v741, 50
      %vm749 = vcmp.lt.s32.totalorder %v742, 50
      %vm750 = vcmp.lt.s32.totalorder %v743, 50
      %vm751 = vcmp.lt.s32.totalorder %v744, 50
      %vm752 = vcmp.lt.s32.totalorder %v745, 50
      %vm753 = vcmp.lt.s32.totalorder %v746, 50
      %vm754 = vcmp.lt.s32.totalorder %v747, 50
      %v755 = vsel %vm748, 1, 0
      %v756 = vsel %vm749, 1, 0
      %v757 = vsel %vm750, 1, 0
      %v758 = vsel %vm751, 1, 0
      %v759 = vsel %vm752, 1, 0
      %v760 = vsel %vm753, 1, 0
      %v761 = vsel %vm754, 1, 0
      %v762 = vcvt.s32.f32 %v755
      %v763 = vcvt.s32.f32 %v756
      %v764 = vcvt.s32.f32 %v757
      %v765 = vcvt.s32.f32 %v758
      %v766 = vcvt.s32.f32 %v759
      %v767 = vcvt.s32.f32 %v760
      %v768 = vcvt.s32.f32 %v761
      %vm769 = vcmask 457728
      %v771 = vsel %vm769, %v740, 0
      %773 = vmatprep.subr.mxu0 0.0
      %774 = vmatpush1.msra.mxu0 %v388
      %775 = vmatprep.subr.mxu0 0.0
      %776 = vmatpush1.msra.mxu0 %v389
      %777 = vmatprep.subr.mxu0 0.0
      %778 = vmatpush1.msra.mxu0 %v390
      %779 = vmatprep.subr.mxu0 0.0
      %780 = vmatpush1.msra.mxu0 %v391
      %781 = vmatprep.subr.mxu0 0.0
      %782 = vmatpush1.msra.mxu0 %v392
      %783 = vmatprep.subr.mxu0 0.0
      %784 = vmatpush1.msra.mxu0 %v393
      %785 = vmatprep.subr.mxu0 0.0
      %786 = vmatpush1.msra.mxu0 %v394
      %787 = vmatprep.subr.mxu0 0.0
      %788 = vmatpush1.msra.mxu0 0.0
      %789 = vmatprep.subr.mxu0 0.0
      %790 = vmatpush1.msra.mxu0 0.0
      %791 = vmatprep.subr.mxu0 0.0
      %792 = vmatpush1.msra.mxu0 0.0
      %793 = vmatprep.subr.mxu0 0.0
      %794 = vmatpush1.msra.mxu0 0.0
      %795 = vmatprep.subr.mxu0 0.0
      %796 = vmatpush1.msra.mxu0 0.0
      %797 = vmatprep.subr.mxu0 0.0
      %798 = vmatpush1.msra.mxu0 0.0
      %799 = vmatprep.subr.mxu0 0.0
      %800 = vmatpush1.msra.mxu0 0.0
      %801 = vmatprep.subr.mxu0 0.0
      %802 = vmatpush1.msra.mxu0 0.0
      %803 = vmatprep.subr.mxu0 0.0
      %804 = vmatpush1.msra.mxu0 0.0
      %805 = vmatprep.subr.mxu0 0.0
      %806 = vmatpush1.msra.mxu0 0.0
      %807 = vmatprep.subr.mxu0 0.0
      %808 = vmatpush1.msra.mxu0 0.0
      %809 = vmatprep.subr.mxu0 0.0
      %810 = vmatpush1.msra.mxu0 0.0
      %811 = vmatprep.subr.mxu0 0.0
      %812 = vmatpush1.msra.mxu0 0.0
      %813 = vmatprep.subr.mxu0 0.0
      %814 = vmatpush1.msra.mxu0 0.0
      %815 = vmatprep.subr.mxu0 0.0
      %816 = vmatpush1.msra.mxu0 0.0
      %817 = vmatprep.subr.mxu0 0.0
      %818 = vmatpush1.msra.mxu0 0.0
      %819 = vmatprep.subr.mxu0 0.0
      %820 = vmatpush1.msra.mxu0 0.0
      %821 = vmatprep.subr.mxu0 0.0
      %822 = vmatpush1.msra.mxu0 0.0
      %823 = vmatprep.subr.mxu0 0.0
      %824 = vmatpush1.msra.mxu0 0.0
      %825 = vmatprep.subr.mxu0 0.0
      %826 = vmatpush1.msra.mxu0 0.0
      %827 = vmatprep.subr.mxu0 0.0
      %828 = vmatpush1.msra.mxu0 0.0
      %829 = vmatprep.subr.mxu0 0.0
      %830 = vmatpush1.msra.mxu0 0.0
      %831 = vmatprep.subr.mxu0 0.0
      %832 = vmatpush1.msra.mxu0 0.0
      %833 = vmatprep.subr.mxu0 0.0
      %834 = vmatpush1.msra.mxu0 0.0
      %835 = vmatprep.subr.mxu0 0.0
      %836 = vmatpush1.msra.mxu0 0.0
      %837 = vmatprep.mubr.f32.mxu0 0.0
      %838 = vmatmul.mubr.f32.gmra.mrb[0].mxu0 %v771
      %v839 = vpop.f32.mrb[0].mxu0
      %v840 = vadd.f32 0.0, %v839
      %v841 = vpop.f32.mrb[0].mxu0
      %842 = vdwg.mxu0
      %v843 = vld [vmem:[%s5] sm:$0x1]
      %v844 = vadd.f32 %v843, %v840
      %vm845 = vcmask 253952
      %846 = vst.msk [vmem:[%s5] sm:$0x1] %vm845, %v844
      %v847 = vmul.f32 %v600, %v762
      %v848 = vmul.f32 %v601, %v763
      %v849 = vmul.f32 %v602, %v764
      %v850 = vmul.f32 %v603, %v765
      %v851 = vmul.f32 %v604, %v766
      %v852 = vmul.f32 %v605, %v767
      %v853 = vmul.f32 %v606, %v768
      %v854 = vmul.f32 %v847, %v847
      %v855 = vmul.f32 %v848, %v848
      %v856 = vmul.f32 %v849, %v849
      %v857 = vmul.f32 %v850, %v850
      %v858 = vmul.f32 %v851, %v851
      %v859 = vmul.f32 %v852, %v852
      %v860 = vmul.f32 %v853, %v853
      %v861 = vsel %vm83, %v854, 0.0
      %v862 = vsel %vm83, %v855, 0.0
      %v863 = vadd.f32 %v861, %v862
      %v864 = vsel %vm83, %v856, 0.0
      %v865 = vadd.f32 %v863, %v864
      %v866 = vsel %vm83, %v857, 0.0
      %v867 = vadd.f32 %v865, %v866
      %v868 = vsel %vm83, %v858, 0.0
      %v869 = vadd.f32 %v867, %v868
      %v870 = vsel %vm83, %v859, 0.0
      %v871 = vadd.f32 %v869, %v870
      %v872 = vsel %vm83, %v860, 0.0
      %v873 = vadd.f32 %v871, %v872
      %874 = vadd.xlane.f32.xlu0 %v873
      %v875 = vpop.xlane.xlu0 %874
      %v876 = vrot.slane %v875, 4
      %v877 = vadd.f32 %v875, %v876
      %v878 = vrot.slane %v877, 2
      %v879 = vadd.f32 %v877, %v878
      %v880 = vrot.slane %v879, 1
      %v881 = vadd.f32 %v879, %v880
      %s882 = vtos %v881
      %v883 = vstv %s882
      %vm884 = vcmask 0
      %885 = vst.msk [vmem:[#allocation2] sm:$0x1] %vm884, %v883
    $region25: #{vector_quantizer_forward.1} parent=1 // pred_fallthru
      _
    %s886 = sadd.s32 0, 0
    %s887 = smul.u32 7, %s886
    %p888 = scmp.lt.s32.totalorder %s887, 6
    %s889 = scalar_select %p888, %s887, 6
    %s890 = smul.addr %s889, 8
    %s891 = scalar_lea.vmem %s3, %s890
    %s892 = sadd.s32 0, 0
    %p893 = scmp.lt.s32.totalorder %s892, 0
    %s894 = scalar_select %p893, %s892, 0
    %s895 = scalar_lea.vmem %s4, %s894
    // Predicated region
    $region26: #{vector_quantizer_forward.1} parent=1 // pred_check
      _
    $region27: #{vector_quantizer_forward.1} parent=1 // pred_check_branch
      %897 = sbr.rel (0) target = $region29
    $region28: #{vector_quantizer_forward.1} parent=1 // pred_region
      %s898 = sadd.s32 0, 0
      %s899 = smul.u32 7, %s898
    $region29: #{vector_quantizer_forward.1} parent=1 // pred_fallthru
      _
    // Predicated region
    $region30: #{vector_quantizer_forward.1} parent=1 // pred_check
      _
    $region31: #{vector_quantizer_forward.1} parent=1 // pred_check_branch
      %901 = sbr.rel (0) target = $region33
    $region32: #{vector_quantizer_forward.1} parent=1 // pred_region
      %s902 = sadd.s32 0, 0
    $region33: #{vector_quantizer_forward.1} parent=1 // pred_fallthru
      _
    // Predicated region
    $region34: #{vector_quantizer_forward.1} parent=1 // pred_check
      _
    $region35: #{vector_quantizer_forward.1} parent=1 // pred_check_branch
      %904 = sbr.rel (0) target = $region37
    $region36: #{vector_quantizer_forward.1} parent=1 // pred_region
      _
    $region37: #{vector_quantizer_forward.1} parent=1 // pred_fallthru
      _
    // Predicated region
    $region38: #{vector_quantizer_forward.1} parent=1 // pred_check
      _
    $region39: #{vector_quantizer_forward.1} parent=1 // pred_check_branch
      %906 = sbr.rel (0) target = $region41
    $region40: #{vector_quantizer_forward.1} parent=1 // pred_region
      %s907 = sadd.s32 0, 0
      %s909 = ssub.s32 16, 16
      %910 = vsyncadd [#allocation3], %s909
      %s911 = smul.addr %s907, 16
      %s912 = scalar_lea.hbm %s6, %s911
      %s914 = sshll.u32 [#allocation2], 4
      %s915 = int_to_ptr.vmem [resolvable:$true] %s914
      %917 = dma.vmem_to_hbm [thread:$0]  %s915, 16, %s912, [#allocation3]
    $region41: #{vector_quantizer_forward.1} parent=1 // pred_fallthru
      _
    // Predicated region
    $region42: #{vector_quantizer_forward.1} parent=1 // pred_check
      _
    $region43: #{vector_quantizer_forward.1} parent=1 // pred_check_branch
      %919 = sbr.rel (0) target = $region45
    $region44: #{vector_quantizer_forward.1} parent=1 // pred_region
      %s920 = sadd.s32 0, 0
      %s921 = smul.u32 7, %s920
      %p922 = scmp.lt.s32.totalorder %s921, 6
      %s923 = scalar_select %p922, %s921, 6
      %s924 = smul.addr %s923, 8
      %s925 = scalar_lea.vmem %s3, %s924
    $region45: #{vector_quantizer_forward.1} parent=1 // pred_fallthru
      _
    // Predicated region
    $region46: #{vector_quantizer_forward.1} parent=1 // pred_check
      _
    $region47: #{vector_quantizer_forward.1} parent=1 // pred_check_branch
      %927 = sbr.rel (0) target = $region49
    $region48: #{vector_quantizer_forward.1} parent=1 // pred_region
      %s928 = sadd.s32 0, 0
      %p929 = scmp.lt.s32.totalorder %s928, 0
      %s930 = scalar_select %p929, %s928, 0
      %s931 = scalar_lea.vmem %s4, %s930
    $region49: #{vector_quantizer_forward.1} parent=1 // pred_fallthru
      _
    // Predicated region
    $region50: #{vector_quantizer_forward.1} parent=1 // pred_check
      _
    $region51: #{vector_quantizer_forward.1} parent=1 // pred_check_branch
      %933 = sbr.rel (0) target = $region53
    $region52: #{vector_quantizer_forward.1} parent=1 // pred_region
      _
    $region53: #{vector_quantizer_forward.1} parent=1 // pred_fallthru
      _
    // Predicated region
    $region54: #{vector_quantizer_forward.1} parent=1 // pred_check
      _
    $region55: #{vector_quantizer_forward.1} parent=1 // pred_check_branch
      %935 = sbr.rel (0) target = $region57
    $region56: #{vector_quantizer_forward.1} parent=1 // pred_region
      %936 = dma.done [#allocation3], 16
    $region57: #{vector_quantizer_forward.1} parent=1 // pred_fallthru
      _
    %937 = vsyncpa [#allocation3], 1

</llo_original>
